<compile_context>
chip_gen: v7x
topology: tpu7x:2x2x1
jax: 0.10.0
libtpu: 0.0.40
codegen_flags: <defaults>
</compile_context>

<pallas_src>
import functools

import jax
import jax.numpy as jnp
from jax import lax
from jax.experimental import pallas as pl
from jax.experimental.pallas import tpu as pltpu

_NEG_BIG = -1e30   # finite "-inf" used to mask padded src columns
_LANE = 128
_SUBLANE = 8


def _round_up(x, m):
    return (x + m - 1) // m * m


def _softplus(x):
    # numerically stable softplus, matches torch.nn.functional.softplus (beta=1)
    return jnp.maximum(x, 0.0) + jnp.log1p(jnp.exp(-jnp.abs(x)))


def _device_kind():
    try:
        return jax.devices()[0].device_kind.lower()
    except Exception:   # pragma: no cover - CPU/interpret fallback
        return ""


# --------------------------------------------------------------------------- kernels
def _src_proj_kernel(h_ref, w_ref, a_ref, z_ref, s_ref, *, item_user):
    """z_src = [softplus](h_src @ W_src^T), plus the raw src attention score.

    Column layout of z (d_pad wide):
      [0:out_dim]  : real features
      d_pad-2      : (item_user=False only) fused score column  W_src^T a_src
      d_pad-1      : constant 1.0 -> lets the attention kernel accumulate the softmax
                     denominator on the MXU (f32), instead of a cross-lane sum(p).
    NOTE: padded src ROWS are softplus(0)=ln2 when item_user=True (not zero); they are
    harmless only because the wrapper masks their scores to -1e30 in s_src_row.
    """
    z = jnp.dot(h_ref[...], w_ref[...], preferred_element_type=jnp.float32)
    if item_user:
        z = _softplus(z)                              # f32 elementwise
        # score dot as (tile, D) @ (D, 1): stays on the MXU, no XLU reduction.
        s = jnp.dot(z, a_ref[...], preferred_element_type=jnp.float32)
    else:
        s = z[:, -2:-1]                               # fused score column (see wrapper)
    s_ref[...] = s
    # dedicate the last padded column to the constant 1.0 (ones-column trick)
    col = lax.broadcasted_iota(jnp.int32, z.shape, dimension=1)
    z = jnp.where(col == (z.shape[1] - 1), 1.0, z)
    z_ref[...] = z.astype(z_ref.dtype)


def _att_kernel(s_dst_ref, z_src_ref, s_src_ref, out_ref, m_sc, *, score_dtype):
    """Flash-style online softmax over the src axis for one dst tile.

    out_ref (f32, resident across the k axis) doubles as the accumulator; its last
    column accumulates sum(p) via the ones-column of z_src (f32, on the MXU).
    """
    k = pl.program_id(1)

    @pl.when(k == 0)
    def _():
        m_sc[...] = jnp.full_like(m_sc, -jnp.inf)
        out_ref[...] = jnp.zeros_like(out_ref)

    sdt = score_dtype
    # e_ji = leaky_relu(a_dst . z_dst_j + a_src . z_src_i); bf16 on v6e/v7x, f32 on v5e.
    e = s_dst_ref[...].astype(sdt) + s_src_ref[...].astype(sdt)   # (tile_nd, tile_ns)
    e = jnp.maximum(e, 0.01 * e)                                  # leaky_relu (2 VPU ops)

    m_prev = m_sc[...]                                            # f32 running max
    m_new = jnp.maximum(m_prev,
                        jnp.max(e, axis=-1, keepdims=True).astype(jnp.float32))
    corr = jnp.exp(m_prev - m_new)                                # (tile_nd, 1) f32
    p = jnp.exp(e - m_new.astype(sdt))                            # unnormalized probs
    m_sc[...] = m_new

    # p @ z_src also accumulates the softmax denominator through the ones column.
    out_ref[...] = corr * out_ref[...] + jnp.dot(
        p.astype(z_src_ref.dtype), z_src_ref[...], preferred_element_type=jnp.float32)

    @pl.when(k == pl.num_programs(1) - 1)
    def _():
        acc = out_ref[...]
        # deferred normalization: exact reciprocal, runs once per dst tile (free).
        out_ref[...] = acc * pl.reciprocal(acc[:, -1:], approx=False)


# --------------------------------------------------------------------------- wrapper
def motivation_att_layer2(h_src, h_dst, w_src, w_dst, w_attn, item_user=False, *,
                          compute_dtype=jnp.bfloat16, tile_nd=512, tile_ns=2048,
                          score_dtype=None, vmem_limit_bytes=None):
    """Dense (fully connected bipartite src->dst) MotivationAttLayer2 forward.

    h_src: (Ns, in_dim), h_dst: (Nd, in_dim)
    w_src, w_dst: (out_dim, in_dim) as in nn.Linear; w_attn: (1, 2*out_dim).
    Returns (Nd, out_dim) float32.
    """
    n_src, in_dim = h_src.shape
    n_dst, _ = h_dst.shape
    out_dim = w_src.shape[0]

    cdt = jnp.dtype(compute_dtype)
    f32 = jnp.float32

    kind = _device_kind()
    if vmem_limit_bytes is None:
        # v5e/v6e: 128 MiB physical VMEM -> 96 MiB scoped; v7x: 64 MiB -> keep 48 MiB.
        vmem_limit_bytes = (96 * 1024 * 1024 if ("v5" in kind or "v6" in kind)
                            else 48 * 1024 * 1024)
    if score_dtype is None:
        # bf16 score math only where the VPU/EUP are bf16-capable (v6e/v7x); v5e -> f32.
        score_dtype = (jnp.bfloat16 if (cdt == jnp.bfloat16 and "v5" not in kind)
                       else jnp.float32)
    score_dtype = jnp.dtype(score_dtype)

    # lane-dense feature dim with >= 2 spare columns (fused score col + ones col)
    d_pad = _round_up(max(out_dim + 2, _LANE), _LANE)

    ns_al = _round_up(n_src, _LANE)
    tile_ns = min(tile_ns, ns_al)
    ns_pad = _round_up(ns_al, tile_ns)
    n_s_tiles = ns_pad // tile_ns

    nd_al = _round_up(n_dst, _SUBLANE)
    tile_nd = min(tile_nd, nd_al)
    # keep >= 2 dst tiles for v7x megacore sharding when the problem is big enough
    if nd_al >= 256 and pl.cdiv(nd_al, tile_nd) < 2:
        tile_nd = _round_up(pl.cdiv(nd_al, 2), _SUBLANE)
    nd_pad = _round_up(nd_al, tile_nd)
    n_d_tiles = nd_pad // tile_nd

    # One-time layout plumbing (XLA): transpose + zero-pad weights to a lane-dense D,
    # fuse the dst score weight, and (item_user=False) fuse the src score weight too.
    wsrc_t = jnp.zeros((in_dim, d_pad), f32).at[:, :out_dim].set(w_src.T.astype(f32))
    if not item_user:
        fused_a_src = w_src.T.astype(f32) @ w_attn[0, :out_dim].astype(f32)  # (in_dim,)
        wsrc_t = wsrc_t.at[:, d_pad - 2].set(fused_a_src)
    a_src_col = jnp.zeros((d_pad, 1), f32).at[:out_dim, 0].set(
        w_attn[0, :out_dim].astype(f32))
    wdst_eff = (w_dst.T.astype(f32) @ w_attn[0, out_dim:].astype(f32))[:, None]  # (in,1)

    h_src_p = jnp.zeros((ns_pad, in_dim), cdt).at[:n_src].set(h_src.astype(cdt))
    wsrc_c = wsrc_t.astype(cdt)

    # ---- dst score: tiny (Nd, in_dim)@(in_dim, 1) matvec, plain XLA (no kernel) ----
    s_dst = jnp.zeros((nd_pad, 1), f32).at[:n_dst].set(h_dst.astype(f32) @ wdst_eff)

    # ---- pre-pass: z_src (+ raw src score), hoisted out of the Nd loop ----
    z_src, s_src_col = pl.pallas_call(
        functools.partial(_src_proj_kernel, item_user=item_user),
        out_shape=(jax.ShapeDtypeStruct((ns_pad, d_pad), cdt),
                   jax.ShapeDtypeStruct((ns_pad, 1), f32)),
        grid_spec=pltpu.PrefetchScalarGridSpec(
            num_scalar_prefetch=0,
            grid=(n_s_tiles,),
            in_specs=[pl.BlockSpec((tile_ns, in_dim), lambda i: (i, 0)),
                      pl.BlockSpec((in_dim, d_pad), lambda i: (0, 0)),
                      pl.BlockSpec((d_pad, 1), lambda i: (0, 0))],
            out_specs=[pl.BlockSpec((tile_ns, d_pad), lambda i: (i, 0)),
                       pl.BlockSpec((tile_ns, 1), lambda i: (i, 0))]),
        compiler_params=pltpu.CompilerParams(
            dimension_semantics=("parallel",), vmem_limit_bytes=vmem_limit_bytes),
    )(h_src_p, wsrc_c, a_src_col)

    # Mask padded src columns (this is what keeps softplus(0)=ln2 pad rows harmless)
    # and lay the src score out lane-major ONCE, outside the Nd x Ns loop.
    s_src_row = jnp.where(jnp.arange(ns_pad) < n_src,
                          s_src_col[:, 0], _NEG_BIG)[None, :].astype(f32)

    # ---- attention kernel: grid over (Nd tiles, Ns tiles), online softmax ----
    itemsize = jnp.dtype(cdt).itemsize
    cost = pl.CostEstimate(
        flops=int(2 * nd_pad * ns_pad * d_pad + 8 * nd_pad * ns_pad),
        transcendentals=int(nd_pad * ns_pad + nd_pad * n_s_tiles),
        bytes_accessed=int(n_d_tiles * ns_pad * (d_pad * itemsize + 4)  # z_src + s_src
                           + nd_pad * 4                                  # s_dst (resident)
                           + nd_pad * d_pad * 4))                        # out write

    out = pl.pallas_call(
        functools.partial(_att_kernel, score_dtype=score_dtype),
        out_shape=jax.ShapeDtypeStruct((nd_pad, d_pad), f32),
        grid_spec=pltpu.PrefetchScalarGridSpec(
            num_scalar_prefetch=0,
            grid=(n_d_tiles, n_s_tiles),
            in_specs=[pl.BlockSpec((tile_nd, 1), lambda i, k: (i, 0)),
                      pl.BlockSpec((tile_ns, d_pad), lambda i, k: (k, 0)),
                      pl.BlockSpec((1, tile_ns), lambda i, k: (0, k))],
            out_specs=pl.BlockSpec((tile_nd, d_pad), lambda i, k: (i, 0)),
            scratch_shapes=[pltpu.VMEM((tile_nd, 1), f32)]),   # m (running max) only
        compiler_params=pltpu.CompilerParams(
            dimension_semantics=("parallel", "arbitrary"),
            vmem_limit_bytes=vmem_limit_bytes),
        cost_estimate=cost,
    )(s_dst, z_src, s_src_row)

    return out[:n_dst, :out_dim]


# --------------------------------------------------------------------------- testing
def _xavier_normal(key, shape, gain):
    fan_out, fan_in = shape
    std = gain * (2.0 / (fan_in + fan_out)) ** 0.5
    return std * jax.random.normal(key, shape, dtype=jnp.float32)


def _reference(h_src, h_dst, w_src, w_dst, w_attn, item_user=False):
    out_dim = w_src.shape[0]
    z_src = h_src @ w_src.T
    if item_user:
        z_src = jax.nn.softplus(z_src)
    z_dst = h_dst @ w_dst.T
    s_src = z_src @ w_attn[0, :out_dim]          # (Ns,)
    s_dst = z_dst @ w_attn[0, out_dim:]          # (Nd,)
    e = s_dst[:, None] + s_src[None, :]
    e = jnp.where(e > 0, e, 0.01 * e)
    alpha = jax.nn.softmax(e, axis=-1)
    return alpha @ z_src


def _run_case(n_src, n_dst, in_dim, out_dim, key, **kw):
    gain = 2.0 ** 0.5  # nn.init.calculate_gain('relu')
    k_hs, k_hd, k_ws, k_wd, k_wa = jax.random.split(key, 5)
    h_src = jax.random.normal(k_hs, (n_src, in_dim), dtype=jnp.float32)
    h_dst = jax.random.normal(k_hd, (n_dst, in_dim), dtype=jnp.float32)
    w_src = _xavier_normal(k_ws, (out_dim, in_dim), gain)      # fc_src.weight
    w_dst = _xavier_normal(k_wd, (out_dim, in_dim), gain)      # fc_dst.weight
    w_attn = _xavier_normal(k_wa, (1, 2 * out_dim), gain)      # attn_fc.weight

    for item_user in (False, True):
        ref = _reference(h_src, h_dst, w_src, w_dst, w_attn, item_user=item_user)

        out32 = jax.block_until_ready(
            motivation_att_layer2(h_src, h_dst, w_src, w_dst, w_attn,
                                  item_user=item_user,
                                  compute_dtype=jnp.float32, **kw))
        assert out32.shape == (n_dst, out_dim)
        assert bool(jnp.allclose(out32, ref, atol=1e-2, rtol=1e-2)), \
            f"f32 mismatch (item_user={item_user}, n_src={n_src}, n_dst={n_dst})"

        out16 = jax.block_until_ready(
            motivation_att_layer2(h_src, h_dst, w_src, w_dst, w_attn,
                                  item_user=item_user, **kw))
        assert out16.shape == (n_dst, out_dim)
        assert bool(jnp.allclose(out16, ref, atol=5e-2, rtol=5e-2)), \
            f"bf16 mismatch (item_user={item_user}, n_src={n_src}, n_dst={n_dst})"


if __name__ == "__main__":
    key = jax.random.PRNGKey(0)
    k1, k2 = jax.random.split(key)

    # small single-tile case
    _run_case(n_src=16, n_dst=8, in_dim=32, out_dim=16, key=k1)
    # multi-tile case (3 src tiles incl. a partially padded one, 3 dst tiles) to
    # exercise the online softmax, the ones-column denominator and the pad mask
    _run_case(n_src=272, n_dst=24, in_dim=32, out_dim=16, key=k2,
              tile_nd=8, tile_ns=128)

    print("KERNEL_OK")
</pallas_src>

<mosaic_0001>
module attributes {stable_mosaic.version = 11 : i64} {
  func.func @_src_proj_kernel(%arg0: i32, %arg1: memref<128x32xf32, #tpu.memory_space<vmem>>, %arg2: memref<32x128xf32, #tpu.memory_space<vmem>>, %arg3: memref<128x1xf32, #tpu.memory_space<vmem>>, %arg4: memref<128x128xf32, #tpu.memory_space<vmem>>, %arg5: memref<128x1xf32, #tpu.memory_space<vmem>>) attributes {dimension_semantics = [#tpu.dimension_semantics<parallel>], iteration_bounds = array<i64: 1>, scalar_prefetch = 0 : i64, scratch_operands = 0 : i64, tpu.core_type = #tpu.core_type<tc>, window_params = [{transform_indices = @transform_0, window_bounds = array<i64: 128, 32>}, {pipeline_mode = #tpu.pipeline_mode<synchronous>, transform_indices = @transform_1, window_bounds = array<i64: 32, 128>}, {pipeline_mode = #tpu.pipeline_mode<synchronous>, transform_indices = @transform_2, window_bounds = array<i64: 128, 1>}, {transform_indices = @transform_3, window_bounds = array<i64: 128, 128>}, {transform_indices = @transform_4, window_bounds = array<i64: 128, 1>}]} {
    %c0 = arith.constant 0 : index
    %c0_0 = arith.constant 0 : index
    %0 = vector.load %arg1[%c0, %c0_0] : memref<128x32xf32, #tpu.memory_space<vmem>>, vector<128x32xf32>
    %c0_1 = arith.constant 0 : index
    %c0_2 = arith.constant 0 : index
    %1 = vector.load %arg2[%c0_1, %c0_2] : memref<32x128xf32, #tpu.memory_space<vmem>>, vector<32x128xf32>
    %cst = arith.constant dense<0.000000e+00> : vector<128x128xf32>
    %2 = tpu.matmul %0, %1, %cst {dimension_numbers = #tpu.dot_dimension_numbers<[1], [0], [0], [1], [0, 0, 1, 1], [], []>} : vector<128x32xf32>, vector<32x128xf32>, vector<128x128xf32> -> vector<128x128xf32>
    %3 = vector.extract_strided_slice %2 {offsets = [0, 126], sizes = [128, 1], strides = [1, 1]} : vector<128x128xf32> to vector<128x1xf32>
    %c0_3 = arith.constant 0 : index
    %c0_4 = arith.constant 0 : index
    %4 = vector.load %arg5[%c0_3, %c0_4] : memref<128x1xf32, #tpu.memory_space<vmem>>, vector<128x1xf32>
    tpu.vector_store %arg5[%c0_3, %c0_4], %3 {strides = array<i32>} : memref<128x1xf32, #tpu.memory_space<vmem>>, vector<128x1xf32>,
    %5 = tpu.iota {dimensions = array<i32: 1>} : vector<128x128xi32>
    %c127_i32 = arith.constant 127 : i32
    %6 = vector.broadcast %c127_i32 : i32 to vector<128x128xi32>
    %7 = arith.cmpi eq, %5, %6 : vector<128x128xi32>
    %cst_5 = arith.constant 1.000000e+00 : f32
    %8 = vector.broadcast %cst_5 : f32 to vector<128x128xf32>
    %9 = arith.select %7, %8, %2 : vector<128x128xi1>, vector<128x128xf32>
    %c0_6 = arith.constant 0 : index
    %c0_7 = arith.constant 0 : index
    %10 = vector.load %arg4[%c0_6, %c0_7] : memref<128x128xf32, #tpu.memory_space<vmem>>, vector<128x128xf32>
    tpu.vector_store %arg4[%c0_6, %c0_7], %9 {strides = array<i32>} : memref<128x128xf32, #tpu.memory_space<vmem>>, vector<128x128xf32>,
    return
  }
  func.func @transform_0(%arg0: i32) -> (i32, i32) {
    %c0_i32 = arith.constant 0 : i32
    %c0_i32_0 = arith.constant 0 : i32
    return %arg0, %c0_i32 : i32, i32
  }
  func.func @transform_1(%arg0: i32) -> (i32, i32) {
    %c0_i32 = arith.constant 0 : i32
    %c0_i32_0 = arith.constant 0 : i32
    %c0_i32_1 = arith.constant 0 : i32
    return %c0_i32, %c0_i32_0 : i32, i32
  }
  func.func @transform_2(%arg0: i32) -> (i32, i32) {
    %c0_i32 = arith.constant 0 : i32
    %c0_i32_0 = arith.constant 0 : i32
    %c0_i32_1 = arith.constant 0 : i32
    return %c0_i32, %c0_i32_0 : i32, i32
  }
  func.func @transform_3(%arg0: i32) -> (i32, i32) {
    %c0_i32 = arith.constant 0 : i32
    %c0_i32_0 = arith.constant 0 : i32
    return %arg0, %c0_i32 : i32, i32
  }
  func.func @transform_4(%arg0: i32) -> (i32, i32) {
    %c0_i32 = arith.constant 0 : i32
    %c0_i32_0 = arith.constant 0 : i32
    return %arg0, %c0_i32 : i32, i32
  }
}

</mosaic_0001>

<llo_original>
// kernel: tpu_custom_call.1
$region0: #{tpu_custom_call.1}
  #allocation0 [shape = 'u32[]', space=smem, size = 0x4, offset = 0x4, fixed_abs, tag = 'smem constant byte address 0x4 - core index']
  #allocation1 [shape = 'u32[144,128]{1,0:T(1,128)}', space=vmem, size = 0x12000, scoped, tag = 'internal scratch']
  %s0 = inlined_call_operand.vmem [shape: f32[128,32], index: 0, kind: input, shape index: {}]
  %s1 = inlined_call_operand.vmem [shape: f32[32,128], index: 1, kind: input, shape index: {}]
  %s2 = inlined_call_operand.vmem [shape: f32[128,1], index: 2, kind: input, shape index: {}]
  %s3 = inlined_call_operand.hbm [shape: f32[128,128], index: 3, kind: output, shape index: {0}]
  %s4 = inlined_call_operand.vmem [shape: f32[128,1], index: 4, kind: output, shape index: {1}]
  %5 = xla_tuple %s3, %s4
  %s6 = sld [smem:[#allocation0]]
  $region30: #{tpu_custom_call.1} parent=0
    _
  %s8 = ssub.s32 1, %s6
  %s9 = scalar_select 0, %s8, %s6
  $region1: #{tpu_custom_call.1} parent=0
    #allocation2 [shape = 'u8[65536]{0}', space=vmem, size = 0x10000, scoped, tag = 'output window, operand 0, single buffered']
    #allocation3 [shape = 's32[1]{0}', space=sflag, size = 0x4, scoped, tag = 'scoped memory for tpu_custom_call.1']
    %10 = vsyncpa [#allocation3], 0
    // Predicated region
    $region2: #{tpu_custom_call.1} parent=1 // pred_check
      _
    $region3: #{tpu_custom_call.1} parent=1 // pred_check_branch
      %12 = sbr.rel (0) target = $region5
    $region4: #{tpu_custom_call.1} parent=1 // pred_region
      _
    $region5: #{tpu_custom_call.1} parent=1 // pred_fallthru
      _
    // Predicated region
    $region6: #{tpu_custom_call.1} parent=1 // pred_check
      _
    $region7: #{tpu_custom_call.1} parent=1 // pred_check_branch
      %14 = sbr.rel (0) target = $region9
    $region8: #{tpu_custom_call.1} parent=1 // pred_region
      _
    $region9: #{tpu_custom_call.1} parent=1 // pred_fallthru
      _
    // Predicated region
    $region10: #{tpu_custom_call.1} parent=1 // pred_check
      _
    $region11: #{tpu_custom_call.1} parent=1 // pred_check_branch
      %16 = sbr.rel (0) target = $region13
    $region12: #{tpu_custom_call.1} parent=1 // pred_region
      _
    $region13: #{tpu_custom_call.1} parent=1 // pred_fallthru
      _
    %v17 = vld [vmem:[%s0] sm:$0xff]
    %v18 = vld [vmem:[%s0 + $0x8] sm:$0xff]
    %v19 = vld [vmem:[%s0 + $0x10] sm:$0xff]
    %v20 = vld [vmem:[%s0 + $0x18] sm:$0xff]
    %v21 = vld [vmem:[%s0 + $0x20] sm:$0xff]
    %v22 = vld [vmem:[%s0 + $0x28] sm:$0xff]
    %v23 = vld [vmem:[%s0 + $0x30] sm:$0xff]
    %v24 = vld [vmem:[%s0 + $0x38] sm:$0xff]
    %v25 = vld [vmem:[%s0 + $0x40] sm:$0xff]
    %v26 = vld [vmem:[%s0 + $0x48] sm:$0xff]
    %v27 = vld [vmem:[%s0 + $0x50] sm:$0xff]
    %v28 = vld [vmem:[%s0 + $0x58] sm:$0xff]
    %v29 = vld [vmem:[%s0 + $0x60] sm:$0xff]
    %v30 = vld [vmem:[%s0 + $0x68] sm:$0xff]
    %v31 = vld [vmem:[%s0 + $0x70] sm:$0xff]
    %v32 = vld [vmem:[%s0 + $0x78] sm:$0xff]
    %v33 = vld [vmem:[%s1] sm:$0xff]
    %v34 = vld [vmem:[%s1 + $0x8] sm:$0xff]
    %v35 = vld [vmem:[%s1 + $0x10] sm:$0xff]
    %v36 = vld [vmem:[%s1 + $0x18] sm:$0xff]
    %vm37 = vcmask 261120
    %v39 = vsel %vm37, %v17, 0
    %v42 = vsel %vm37, %v18, 0
    %v45 = vsel %vm37, %v19, 0
    %v48 = vsel %vm37, %v20, 0
    %v51 = vsel %vm37, %v21, 0
    %v54 = vsel %vm37, %v22, 0
    %v57 = vsel %vm37, %v23, 0
    %v60 = vsel %vm37, %v24, 0
    %v63 = vsel %vm37, %v25, 0
    %v66 = vsel %vm37, %v26, 0
    %v69 = vsel %vm37, %v27, 0
    %v72 = vsel %vm37, %v28, 0
    %v75 = vsel %vm37, %v29, 0
    %v78 = vsel %vm37, %v30, 0
    %v81 = vsel %vm37, %v31, 0
    %v84 = vsel %vm37, %v32, 0
    %86 = vmatprep.subr.mxu0 0.0
    %87 = vmatpush1.msra.mxu0 %v33
    %88 = vmatprep.subr.mxu0 0.0
    %89 = vmatpush1.msra.mxu0 %v34
    %90 = vmatprep.subr.mxu0 0.0
    %91 = vmatpush1.msra.mxu0 %v35
    %92 = vmatprep.subr.mxu0 0.0
    %93 = vmatpush1.msra.mxu0 %v36
    %94 = vmatprep.subr.mxu0 0.0
    %95 = vmatpush1.msra.mxu0 0.0
    %96 = vmatprep.subr.mxu0 0.0
    %97 = vmatpush1.msra.mxu0 0.0
    %98 = vmatprep.subr.mxu0 0.0
    %99 = vmatpush1.msra.mxu0 0.0
    %100 = vmatprep.subr.mxu0 0.0
    %101 = vmatpush1.msra.mxu0 0.0
    %102 = vmatprep.subr.mxu0 0.0
    %103 = vmatpush1.msra.mxu0 0.0
    %104 = vmatprep.subr.mxu0 0.0
    %105 = vmatpush1.msra.mxu0 0.0
    %106 = vmatprep.subr.mxu0 0.0
    %107 = vmatpush1.msra.mxu0 0.0
    %108 = vmatprep.subr.mxu0 0.0
    %109 = vmatpush1.msra.mxu0 0.0
    %110 = vmatprep.subr.mxu0 0.0
    %111 = vmatpush1.msra.mxu0 0.0
    %112 = vmatprep.subr.mxu0 0.0
    %113 = vmatpush1.msra.mxu0 0.0
    %114 = vmatprep.subr.mxu0 0.0
    %115 = vmatpush1.msra.mxu0 0.0
    %116 = vmatprep.subr.mxu0 0.0
    %117 = vmatpush1.msra.mxu0 0.0
    %118 = vmatprep.subr.mxu0 0.0
    %119 = vmatpush1.msra.mxu0 0.0
    %120 = vmatprep.subr.mxu0 0.0
    %121 = vmatpush1.msra.mxu0 0.0
    %122 = vmatprep.subr.mxu0 0.0
    %123 = vmatpush1.msra.mxu0 0.0
    %124 = vmatprep.subr.mxu0 0.0
    %125 = vmatpush1.msra.mxu0 0.0
    %126 = vmatprep.subr.mxu0 0.0
    %127 = vmatpush1.msra.mxu0 0.0
    %128 = vmatprep.subr.mxu0 0.0
    %129 = vmatpush1.msra.mxu0 0.0
    %130 = vmatprep.subr.mxu0 0.0
    %131 = vmatpush1.msra.mxu0 0.0
    %132 = vmatprep.subr.mxu0 0.0
    %133 = vmatpush1.msra.mxu0 0.0
    %134 = vmatprep.subr.mxu0 0.0
    %135 = vmatpush1.msra.mxu0 0.0
    %136 = vmatprep.subr.mxu0 0.0
    %137 = vmatpush1.msra.mxu0 0.0
    %138 = vmatprep.subr.mxu0 0.0
    %139 = vmatpush1.msra.mxu0 0.0
    %140 = vmatprep.subr.mxu0 0.0
    %141 = vmatpush1.msra.mxu0 0.0
    %142 = vmatprep.subr.mxu0 0.0
    %143 = vmatpush1.msra.mxu0 0.0
    %144 = vmatprep.subr.mxu0 0.0
    %145 = vmatpush1.msra.mxu0 0.0
    %146 = vmatprep.subr.mxu0 0.0
    %147 = vmatpush1.msra.mxu0 0.0
    %148 = vmatprep.subr.mxu0 0.0
    %149 = vmatpush1.msra.mxu0 0.0
    %150 = vmatprep.mubr.f32.mxu0 0.0
    %151 = vmatmul.mubr.f32.gmra.mrb[0].mxu0 %v39
    %v152 = vpop.f32.mrb[0].mxu0
    %v153 = vadd.f32 0.0, %v152
    %v154 = vpop.f32.mrb[0].mxu0
    %155 = vmatprep.mubr.f32.mxu0 0.0
    %156 = vmatmul.mubr.f32.gmra.mrb[0].mxu0 %v42
    %v157 = vpop.f32.mrb[0].mxu0
    %v158 = vadd.f32 0.0, %v157
    %v159 = vpop.f32.mrb[0].mxu0
    %160 = vmatprep.mubr.f32.mxu0 0.0
    %161 = vmatmul.mubr.f32.gmra.mrb[0].mxu0 %v45
    %v162 = vpop.f32.mrb[0].mxu0
    %v163 = vadd.f32 0.0, %v162
    %v164 = vpop.f32.mrb[0].mxu0
    %165 = vmatprep.mubr.f32.mxu0 0.0
    %166 = vmatmul.mubr.f32.gmra.mrb[0].mxu0 %v48
    %v167 = vpop.f32.mrb[0].mxu0
    %v168 = vadd.f32 0.0, %v167
    %v169 = vpop.f32.mrb[0].mxu0
    %170 = vmatprep.mubr.f32.mxu0 0.0
    %171 = vmatmul.mubr.f32.gmra.mrb[0].mxu0 %v51
    %v172 = vpop.f32.mrb[0].mxu0
    %v173 = vadd.f32 0.0, %v172
    %v174 = vpop.f32.mrb[0].mxu0
    %175 = vmatprep.mubr.f32.mxu0 0.0
    %176 = vmatmul.mubr.f32.gmra.mrb[0].mxu0 %v54
    %v177 = vpop.f32.mrb[0].mxu0
    %v178 = vadd.f32 0.0, %v177
    %v179 = vpop.f32.mrb[0].mxu0
    %180 = vmatprep.mubr.f32.mxu0 0.0
    %181 = vmatmul.mubr.f32.gmra.mrb[0].mxu0 %v57
    %v182 = vpop.f32.mrb[0].mxu0
    %v183 = vadd.f32 0.0, %v182
    %v184 = vpop.f32.mrb[0].mxu0
    %185 = vmatprep.mubr.f32.mxu0 0.0
    %186 = vmatmul.mubr.f32.gmra.mrb[0].mxu0 %v60
    %v187 = vpop.f32.mrb[0].mxu0
    %v188 = vadd.f32 0.0, %v187
    %v189 = vpop.f32.mrb[0].mxu0
    %190 = vmatprep.mubr.f32.mxu0 0.0
    %191 = vmatmul.mubr.f32.gmra.mrb[0].mxu0 %v63
    %v192 = vpop.f32.mrb[0].mxu0
    %v193 = vadd.f32 0.0, %v192
    %v194 = vpop.f32.mrb[0].mxu0
    %195 = vmatprep.mubr.f32.mxu0 0.0
    %196 = vmatmul.mubr.f32.gmra.mrb[0].mxu0 %v66
    %v197 = vpop.f32.mrb[0].mxu0
    %v198 = vadd.f32 0.0, %v197
    %v199 = vpop.f32.mrb[0].mxu0
    %200 = vmatprep.mubr.f32.mxu0 0.0
    %201 = vmatmul.mubr.f32.gmra.mrb[0].mxu0 %v69
    %v202 = vpop.f32.mrb[0].mxu0
    %v203 = vadd.f32 0.0, %v202
    %v204 = vpop.f32.mrb[0].mxu0
    %205 = vmatprep.mubr.f32.mxu0 0.0
    %206 = vmatmul.mubr.f32.gmra.mrb[0].mxu0 %v72
    %v207 = vpop.f32.mrb[0].mxu0
    %v208 = vadd.f32 0.0, %v207
    %v209 = vpop.f32.mrb[0].mxu0
    %210 = vmatprep.mubr.f32.mxu0 0.0
    %211 = vmatmul.mubr.f32.gmra.mrb[0].mxu0 %v75
    %v212 = vpop.f32.mrb[0].mxu0
    %v213 = vadd.f32 0.0, %v212
    %v214 = vpop.f32.mrb[0].mxu0
    %215 = vmatprep.mubr.f32.mxu0 0.0
    %216 = vmatmul.mubr.f32.gmra.mrb[0].mxu0 %v78
    %v217 = vpop.f32.mrb[0].mxu0
    %v218 = vadd.f32 0.0, %v217
    %v219 = vpop.f32.mrb[0].mxu0
    %220 = vmatprep.mubr.f32.mxu0 0.0
    %221 = vmatmul.mubr.f32.gmra.mrb[0].mxu0 %v81
    %v222 = vpop.f32.mrb[0].mxu0
    %v223 = vadd.f32 0.0, %v222
    %v224 = vpop.f32.mrb[0].mxu0
    %225 = vmatprep.mubr.f32.mxu0 0.0
    %226 = vmatmul.mubr.f32.gmra.mrb[0].mxu0 %v84
    %v227 = vpop.f32.mrb[0].mxu0
    %v228 = vadd.f32 0.0, %v227
    %v229 = vpop.f32.mrb[0].mxu0
    %230 = vdwg.mxu0
    %247 = vrot.lane.b32.xlu0 %v153, 2
    %v248 = vpop.permute.xlu0 %247
    %249 = vrot.lane.b32.xlu0 %v158, 2
    %v250 = vpop.permute.xlu0 %249
    %251 = vrot.lane.b32.xlu0 %v163, 2
    %v252 = vpop.permute.xlu0 %251
    %253 = vrot.lane.b32.xlu0 %v168, 2
    %v254 = vpop.permute.xlu0 %253
    %255 = vrot.lane.b32.xlu0 %v173, 2
    %v256 = vpop.permute.xlu0 %255
    %257 = vrot.lane.b32.xlu0 %v178, 2
    %v258 = vpop.permute.xlu0 %257
    %259 = vrot.lane.b32.xlu0 %v183, 2
    %v260 = vpop.permute.xlu0 %259
    %261 = vrot.lane.b32.xlu0 %v188, 2
    %v262 = vpop.permute.xlu0 %261
    %263 = vrot.lane.b32.xlu0 %v193, 2
    %v264 = vpop.permute.xlu0 %263
    %265 = vrot.lane.b32.xlu0 %v198, 2
    %v266 = vpop.permute.xlu0 %265
    %267 = vrot.lane.b32.xlu0 %v203, 2
    %v268 = vpop.permute.xlu0 %267
    %269 = vrot.lane.b32.xlu0 %v208, 2
    %v270 = vpop.permute.xlu0 %269
    %271 = vrot.lane.b32.xlu0 %v213, 2
    %v272 = vpop.permute.xlu0 %271
    %273 = vrot.lane.b32.xlu0 %v218, 2
    %v274 = vpop.permute.xlu0 %273
    %275 = vrot.lane.b32.xlu0 %v223, 2
    %v276 = vpop.permute.xlu0 %275
    %277 = vrot.lane.b32.xlu0 %v228, 2
    %v278 = vpop.permute.xlu0 %277
    %vm295 = vcmask 7168
    %296 = vst.msk [vmem:[%s4] sm:$0xff] %vm295, %v248
    %297 = vst.msk [vmem:[%s4 + $0x8] sm:$0xff] %vm295, %v250
    %298 = vst.msk [vmem:[%s4 + $0x10] sm:$0xff] %vm295, %v252
    %299 = vst.msk [vmem:[%s4 + $0x18] sm:$0xff] %vm295, %v254
    %300 = vst.msk [vmem:[%s4 + $0x20] sm:$0xff] %vm295, %v256
    %301 = vst.msk [vmem:[%s4 + $0x28] sm:$0xff] %vm295, %v258
    %302 = vst.msk [vmem:[%s4 + $0x30] sm:$0xff] %vm295, %v260
    %303 = vst.msk [vmem:[%s4 + $0x38] sm:$0xff] %vm295, %v262
    %304 = vst.msk [vmem:[%s4 + $0x40] sm:$0xff] %vm295, %v264
    %305 = vst.msk [vmem:[%s4 + $0x48] sm:$0xff] %vm295, %v266
    %306 = vst.msk [vmem:[%s4 + $0x50] sm:$0xff] %vm295, %v268
    %307 = vst.msk [vmem:[%s4 + $0x58] sm:$0xff] %vm295, %v270
    %308 = vst.msk [vmem:[%s4 + $0x60] sm:$0xff] %vm295, %v272
    %309 = vst.msk [vmem:[%s4 + $0x68] sm:$0xff] %vm295, %v274
    %310 = vst.msk [vmem:[%s4 + $0x70] sm:$0xff] %vm295, %v276
    %311 = vst.msk [vmem:[%s4 + $0x78] sm:$0xff] %vm295, %v278
    %v312 = vlaneseq
    %v313 = vand.u32 %v312, 127
    %vm314 = vcmp.eq.s32.totalorder %v313, 127
    %v315 = vsel %vm314, 1.0, %v153
    %v316 = vsel %vm314, 1.0, %v158
    %v317 = vsel %vm314, 1.0, %v163
    %v318 = vsel %vm314, 1.0, %v168
    %v319 = vsel %vm314, 1.0, %v173
    %v320 = vsel %vm314, 1.0, %v178
    %v321 = vsel %vm314, 1.0, %v183
    %v322 = vsel %vm314, 1.0, %v188
    %v323 = vsel %vm314, 1.0, %v193
    %v324 = vsel %vm314, 1.0, %v198
    %v325 = vsel %vm314, 1.0, %v203
    %v326 = vsel %vm314, 1.0, %v208
    %v327 = vsel %vm314, 1.0, %v213
    %v328 = vsel %vm314, 1.0, %v218
    %v329 = vsel %vm314, 1.0, %v223
    %v330 = vsel %vm314, 1.0, %v228
    %331 = vst [vmem:[#allocation2] sm:$0xff] %v315
    %332 = vst [vmem:[#allocation2 + $0x8] sm:$0xff] %v316
    %333 = vst [vmem:[#allocation2 + $0x10] sm:$0xff] %v317
    %334 = vst [vmem:[#allocation2 + $0x18] sm:$0xff] %v318
    %335 = vst [vmem:[#allocation2 + $0x20] sm:$0xff] %v319
    %336 = vst [vmem:[#allocation2 + $0x28] sm:$0xff] %v320
    %337 = vst [vmem:[#allocation2 + $0x30] sm:$0xff] %v321
    %338 = vst [vmem:[#allocation2 + $0x38] sm:$0xff] %v322
    %339 = vst [vmem:[#allocation2 + $0x40] sm:$0xff] %v323
    %340 = vst [vmem:[#allocation2 + $0x48] sm:$0xff] %v324
    %341 = vst [vmem:[#allocation2 + $0x50] sm:$0xff] %v325
    %342 = vst [vmem:[#allocation2 + $0x58] sm:$0xff] %v326
    %343 = vst [vmem:[#allocation2 + $0x60] sm:$0xff] %v327
    %344 = vst [vmem:[#allocation2 + $0x68] sm:$0xff] %v328
    %345 = vst [vmem:[#allocation2 + $0x70] sm:$0xff] %v329
    %346 = vst [vmem:[#allocation2 + $0x78] sm:$0xff] %v330
    // Predicated region
    $region14: #{tpu_custom_call.1} parent=1 // pred_check
      _
    $region15: #{tpu_custom_call.1} parent=1 // pred_check_branch
      %348 = sbr.rel (0) target = $region17
    $region16: #{tpu_custom_call.1} parent=1 // pred_region
      %s350 = ssub.s32 2048, 2048
      %351 = vsyncadd [#allocation3], %s350
      %s352 = sshll.u32 [#allocation2], 4
      %s353 = int_to_ptr.vmem [resolvable:$true] %s352
      %358 = dma.vmem_to_hbm [thread:$0]  %s353, 2048, %s3, [#allocation3], 128, 128, 8
    $region17: #{tpu_custom_call.1} parent=1 // pred_fallthru
      _
    // Predicated region
    $region18: #{tpu_custom_call.1} parent=1 // pred_check
      _
    $region19: #{tpu_custom_call.1} parent=1 // pred_check_branch
      %360 = sbr.rel (0) target = $region21
    $region20: #{tpu_custom_call.1} parent=1 // pred_region
      _
    $region21: #{tpu_custom_call.1} parent=1 // pred_fallthru
      _
    // Predicated region
    $region22: #{tpu_custom_call.1} parent=1 // pred_check
      _
    $region23: #{tpu_custom_call.1} parent=1 // pred_check_branch
      %362 = sbr.rel (0) target = $region25
    $region24: #{tpu_custom_call.1} parent=1 // pred_region
      %363 = dma.done [#allocation3], 2048
    $region25: #{tpu_custom_call.1} parent=1 // pred_fallthru
      _
    // Predicated region
    $region26: #{tpu_custom_call.1} parent=1 // pred_check
      _
    $region27: #{tpu_custom_call.1} parent=1 // pred_check_branch
      %365 = sbr.rel (0) target = $region29
    $region28: #{tpu_custom_call.1} parent=1 // pred_region
      _
    $region29: #{tpu_custom_call.1} parent=1 // pred_fallthru
      _
    %366 = vsyncpa [#allocation3], 1

</llo_original>
